<compile_context>
chip_gen: v7x
topology: tpu7x:2x2x1
jax: 0.10.0
libtpu: 0.0.40
codegen_flags: <defaults>
</compile_context>

<pallas_src>
import jax
import jax.numpy as jnp
from jax.experimental import pallas as pl
from jax.experimental.pallas import tpu as pltpu

HIDDEN = 32


def _round_up(n, m):
    return ((n + m - 1) // m) * m


def _cdiv(a, b):
    return -(-a // b)


# --------------------------------------------------------------------------------------
# Kernel
# --------------------------------------------------------------------------------------
def _critic_kernel(x_ref, w1_ref, b1_ref, w2_ref, b2_ref, o_ref):
    # x_ref : (TBp, P*in_size)  packed, lane-dense batch tile (stream dtype)
    # w1_ref: (P*in_size, P*32) block-diagonal layer-1 weight, VMEM resident
    # b1_ref: (1, P*32)         tiled layer-1 bias (f32)
    # w2_ref: (P*32, P)         block-diagonal layer-2 weight (f32)
    # b2_ref: (1, 1)            layer-2 bias, SMEM scalar
    # o_ref : (TBp, P)          packed output tile (f32)
    h = jnp.dot(x_ref[...], w1_ref[...], preferred_element_type=jnp.float32)
    h = jnp.maximum(h + b1_ref[...], 0.0)                       # (TBp, P*32), ReLU
    y = jnp.dot(h, w2_ref[...], preferred_element_type=jnp.float32)  # (TBp, P)
    o_ref[...] = (y + b2_ref[0, 0]).astype(o_ref.dtype)


# --------------------------------------------------------------------------------------
# VMEM sizing (padded footprints, generation aware)
# --------------------------------------------------------------------------------------
def _vmem_budget():
    """Returns (working_budget_bytes, vmem_limit_bytes) based on the chip generation."""
    phys = None
    try:
        info = pltpu.get_tpu_info()
        phys = getattr(info, "vmem_capacity_bytes", None)
    except Exception:  # query unavailable (e.g. interpret mode) -> be conservative
        phys = None
    if phys is None:
        phys = 64 * 1024 * 1024  # assume v7x-like (smallest VMEM) if unknown
    if phys >= 96 * 1024 * 1024:
        # v5e / v6e: 128 MiB physical per TensorCore.
        return 72 * 1024 * 1024, 96 * 1024 * 1024
    # v7x: 64 MiB physical per TensorCore -> cap padded working set well below it.
    return 36 * 1024 * 1024, 48 * 1024 * 1024


def _padded_lane(n):
    return _round_up(n, 128)


def _vmem_footprint(tbp, P, in_size, x_bytes, x_buffers):
    """Padded VMEM bytes for one tile of TBp packed rows (+ resident params)."""
    lx_pad = _padded_lane(P * in_size)
    lh_pad = _padded_lane(P * HIDDEN)
    lo_pad = _padded_lane(P)
    per_row = (
        x_buffers * lx_pad * x_bytes   # pipelined x buffers
        + 2 * lh_pad * 4               # layer-1 activation + elementwise temp (f32)
        + 2 * lo_pad * 4               # double-buffered output block (f32)
    )
    fixed = (
        _round_up(P * in_size, 8) * lh_pad * x_bytes   # w1_block (resident)
        + 8 * lh_pad * 4                               # b1_block (sublane padded)
        + _round_up(P * HIDDEN, 8) * lo_pad * 4        # w2_block
        + (2 << 20)                                    # misc / compiler scratch headroom
    )
    return fixed + tbp * per_row


def _pick_tbp(P, in_size, x_bytes, working_budget, x_buffers):
    base = _vmem_footprint(0, P, in_size, x_bytes, x_buffers)
    per_row = _vmem_footprint(1, P, in_size, x_bytes, x_buffers) - base
    tbp = max(8, (working_budget - base) // max(per_row, 1))
    return max(8, (tbp // 8) * 8)


# --------------------------------------------------------------------------------------
# Wrapper
# --------------------------------------------------------------------------------------
def critic_net(x, w1, b1, w2, b2, *, block_rows=None, stream_dtype=None):
    """CriticNet forward: relu(x @ w1 + b1) @ w2.T + b2.

    x : [B, in_size] float32
    w1: [in_size, 32]   (transposed w.r.t. torch nn.Linear.weight)
    b1: [32] or [1, 32]
    w2: [1, 32]         (torch layout of the second Linear weight)
    b2: scalar / [1] / [1, 1]
    stream_dtype: optional dtype (e.g. jnp.bfloat16) for the x / w1 HBM stream;
                  accumulation and output stay fp32.  Default keeps fp32 end-to-end.
    returns [B, 1] float32
    """
    B, in_size = x.shape
    if w1.shape != (in_size, HIDDEN) or w2.shape != (1, HIDDEN):
        raise ValueError("weight shapes must be (in_size, 32) and (1, 32)")

    b1 = jnp.asarray(b1, jnp.float32).reshape(1, HIDDEN)
    b2 = jnp.asarray(b2, jnp.float32).reshape(1, 1)

    x_dtype = jnp.dtype(stream_dtype) if stream_dtype is not None else jnp.dtype(x.dtype)
    x_bytes = x_dtype.itemsize

    # Pack factor: make the x stream lane-dense when in_size << 128.
    P = 1 if in_size >= 128 else max(1, min(128 // in_size, 64))
    gran = 8 * P                      # TB granularity: TBp multiple of 8 sublanes
    Lx, Nh = P * in_size, P * HIDDEN

    working_budget, vmem_limit = _vmem_budget()
    x_buffers = 3                     # budget for a triple-buffered x stream

    if block_rows is not None:
        TB = _round_up(block_rows, gran)
    else:
        TB = _pick_tbp(P, in_size, x_bytes, working_budget, x_buffers) * P
    TB = max(gran, min(TB, _round_up(B, gran)))   # don't over-pad tiny batches

    num_tiles = _cdiv(B, TB)
    if num_tiles > 1 and num_tiles % 2 == 1:
        # Even tile count -> balanced work across v7x's two TensorCores.
        tb2 = _round_up(_cdiv(B, num_tiles + 1), gran)
        if _cdiv(B, tb2) % 2 == 0:
            TB = tb2
            num_tiles = _cdiv(B, TB)
    B_pad = num_tiles * TB
    tbp = TB // P

    # ---- wrapper-side data prep (one-time XLA ops, outside the hot loop) ------------
    x_p = x if B_pad == B else jnp.pad(x, ((0, B_pad - B), (0, 0)))
    x_packed = x_p.reshape(B_pad // P, Lx).astype(x_dtype)

    eye_p = jnp.eye(P, dtype=jnp.float32)
    w1_f32 = jnp.asarray(w1, jnp.float32)
    w2_f32 = jnp.asarray(w2, jnp.float32)
    w1_block = jnp.kron(eye_p, w1_f32).astype(x_dtype)   # (P*in_size, P*32) block-diag
    b1_block = jnp.tile(b1, (1, P))                      # (1, P*32)
    w2_block = jnp.kron(eye_p, w2_f32.T)                 # (P*32, P) block-diag, f32

    # ---- BlockSpecs -----------------------------------------------------------------
    x_spec = pl.BlockSpec((tbp, Lx), lambda j: (j, 0))
    use_extra_buffering = (
        num_tiles >= 3
        and _vmem_footprint(tbp, P, in_size, x_bytes, 3) <= working_budget
        and hasattr(pl, "Buffered")
    )
    if use_extra_buffering:
        try:
            x_spec = pl.BlockSpec((tbp, Lx), lambda j: (j, 0),
                                  pipeline_mode=pl.Buffered(3))
        except TypeError:   # pipeline_mode kwarg not available in this build
            x_spec = pl.BlockSpec((tbp, Lx), lambda j: (j, 0))

    cost = pl.CostEstimate(
        flops=2 * B_pad * in_size * HIDDEN + 2 * B_pad * HIDDEN,
        transcendentals=0,
        bytes_accessed=(B_pad * in_size * x_bytes        # x stream
                        + Lx * Nh * x_bytes              # w1_block
                        + Nh * 4 + Nh * P * 4 + 4        # b1 / w2 / b2
                        + B_pad * 4),                    # output
    )

    out = pl.pallas_call(
        _critic_kernel,
        out_shape=jax.ShapeDtypeStruct((B_pad // P, P), jnp.float32),
        grid_spec=pltpu.PrefetchScalarGridSpec(
            num_scalar_prefetch=0,
            grid=(num_tiles,),
            in_specs=[
                # Streamed, pipelined, lane-dense batch tile of x (dominant stream).
                x_spec,
                # Parameters: constant index_maps -> DMA'd once, VMEM resident.
                pl.BlockSpec((Lx, Nh), lambda j: (0, 0)),
                pl.BlockSpec((1, Nh), lambda j: (0, 0)),
                pl.BlockSpec((Nh, P), lambda j: (0, 0)),
                # Layer-2 bias lives in SMEM, read as a scalar.
                pl.BlockSpec(memory_space=pltpu.MemorySpace.SMEM),
            ],
            out_specs=pl.BlockSpec((tbp, P), lambda j: (j, 0)),
        ),
        compiler_params=pltpu.CompilerParams(
            # Batch tiles are independent -> shard across both TensorCores on v7x.
            dimension_semantics=("parallel",),
            vmem_limit_bytes=vmem_limit,
        ),
        cost_estimate=cost,
    )(x_packed, w1_block, b1_block, w2_block, b2)

    # (B_pad/P, P) row-major flattens back to original row order.
    return out.reshape(B_pad, 1)[:B]


def init_params(key, in_size, hidden=HIDDEN):
    """U(-1/sqrt(fan_in), 1/sqrt(fan_in)) init matching torch nn.Linear defaults."""
    k1, k2, k3, k4 = jax.random.split(key, 4)
    bound1 = 1.0 / (in_size ** 0.5)
    w1 = jax.random.uniform(k1, (in_size, hidden), jnp.float32, -bound1, bound1)
    b1 = jax.random.uniform(k2, (1, hidden), jnp.float32, -bound1, bound1)
    bound2 = 1.0 / (hidden ** 0.5)
    w2 = jax.random.uniform(k3, (1, hidden), jnp.float32, -bound2, bound2)
    b2 = jax.random.uniform(k4, (1, 1), jnp.float32, -bound2, bound2)
    return w1, b1, w2, b2


if __name__ == "__main__":
    key = jax.random.PRNGKey(0)
    kx, kx2, kp = jax.random.split(key, 3)

    in_size = 16
    w1, b1, w2, b2 = init_params(kp, in_size)

    def reference(xv):
        h = jnp.maximum(xv @ w1 + b1, 0.0)
        return h @ w2.T + b2

    # Small, module-consistent shapes (single tile).
    x = jax.random.normal(kx, (8, in_size), jnp.float32)
    y = critic_net(x, w1, b1, w2, b2)
    jax.block_until_ready(y)
    assert y.shape == (8, 1)
    assert jnp.allclose(y, reference(x), atol=1e-4, rtol=1e-4)

    # Multi-tile path: even tile count (4 tiles of 192 rows), triple-buffered x stream,
    # non-multiple batch exercising the padding + packed reshape.
    x2 = jax.random.normal(kx2, (600, in_size), jnp.float32)
    y2 = critic_net(x2, w1, b1, w2, b2, block_rows=192)
    jax.block_until_ready(y2)
    assert y2.shape == (600, 1)
    assert jnp.allclose(y2, reference(x2), atol=1e-4, rtol=1e-4)

    # Optional bf16 streaming of x / w1 (halves the dominant HBM stream); validated
    # against the fp32 reference with a tolerance appropriate for bf16 inputs.
    y3 = critic_net(x2, w1, b1, w2, b2, block_rows=192, stream_dtype=jnp.bfloat16)
    jax.block_until_ready(y3)
    assert y3.shape == (600, 1)
    assert jnp.allclose(y3, reference(x2), atol=5e-2, rtol=5e-2)

    print("KERNEL_OK")
</pallas_src>

<mosaic_0001>
module attributes {stable_mosaic.version = 11 : i64} {
  func.func @_critic_kernel(%arg0: i32, %arg1: memref<8x128xf32, #tpu.memory_space<vmem>>, %arg2: memref<128x256xf32, #tpu.memory_space<vmem>>, %arg3: memref<1x256xf32, #tpu.memory_space<vmem>>, %arg4: memref<256x8xf32, #tpu.memory_space<vmem>>, %arg5: memref<1x1xf32, #tpu.memory_space<smem>>, %arg6: memref<8x8xf32, #tpu.memory_space<vmem>>) attributes {dimension_semantics = [#tpu.dimension_semantics<parallel>], iteration_bounds = array<i64: 1>, scalar_prefetch = 0 : i64, scratch_operands = 0 : i64, tpu.core_type = #tpu.core_type<tc>, window_params = [{transform_indices = @transform_0, window_bounds = array<i64: 8, 128>}, {pipeline_mode = #tpu.pipeline_mode<synchronous>, transform_indices = @transform_1, window_bounds = array<i64: 128, 256>}, {pipeline_mode = #tpu.pipeline_mode<synchronous>, transform_indices = @transform_2, window_bounds = array<i64: 1, 256>}, {pipeline_mode = #tpu.pipeline_mode<synchronous>, transform_indices = @transform_3, window_bounds = array<i64: 256, 8>}, {transform_indices = @transform_4, window_bounds = array<i64: 1, 1>}, {transform_indices = @transform_5, window_bounds = array<i64: 8, 8>}]} {
    %c0 = arith.constant 0 : index
    %c0_0 = arith.constant 0 : index
    %0 = vector.load %arg1[%c0, %c0_0] : memref<8x128xf32, #tpu.memory_space<vmem>>, vector<8x128xf32>
    %c0_1 = arith.constant 0 : index
    %c0_2 = arith.constant 0 : index
    %1 = vector.load %arg2[%c0_1, %c0_2] : memref<128x256xf32, #tpu.memory_space<vmem>>, vector<128x256xf32>
    %cst = arith.constant dense<0.000000e+00> : vector<8x256xf32>
    %2 = tpu.matmul %0, %1, %cst {dimension_numbers = #tpu.dot_dimension_numbers<[1], [0], [0], [1], [0, 0, 1, 1], [], []>} : vector<8x128xf32>, vector<128x256xf32>, vector<8x256xf32> -> vector<8x256xf32>
    %c0_3 = arith.constant 0 : index
    %c0_4 = arith.constant 0 : index
    %3 = vector.load %arg3[%c0_3, %c0_4] : memref<1x256xf32, #tpu.memory_space<vmem>>, vector<1x256xf32>
    %4 = vector.broadcast %3 : vector<1x256xf32> to vector<8x256xf32>
    %5 = arith.addf %2, %4 : vector<8x256xf32>
    %cst_5 = arith.constant 0.000000e+00 : f32
    %6 = vector.broadcast %cst_5 : f32 to vector<8x256xf32>
    %7 = arith.maximumf %5, %6 : vector<8x256xf32>
    %c0_6 = arith.constant 0 : index
    %c0_7 = arith.constant 0 : index
    %8 = vector.load %arg4[%c0_6, %c0_7] : memref<256x8xf32, #tpu.memory_space<vmem>>, vector<256x8xf32>
    %cst_8 = arith.constant dense<0.000000e+00> : vector<8x8xf32>
    %9 = tpu.matmul %7, %8, %cst_8 {dimension_numbers = #tpu.dot_dimension_numbers<[1], [0], [0], [1], [0, 0, 1, 1], [], []>} : vector<8x256xf32>, vector<256x8xf32>, vector<8x8xf32> -> vector<8x8xf32>
    %c0_9 = arith.constant 0 : index
    %c0_10 = arith.constant 0 : index
    %10 = memref.load %arg5[%c0_9, %c0_10] : memref<1x1xf32, #tpu.memory_space<smem>>
    %11 = vector.broadcast %10 : f32 to vector<8x8xf32>
    %12 = arith.addf %9, %11 : vector<8x8xf32>
    %c0_11 = arith.constant 0 : index
    %c0_12 = arith.constant 0 : index
    %13 = vector.load %arg6[%c0_11, %c0_12] : memref<8x8xf32, #tpu.memory_space<vmem>>, vector<8x8xf32>
    tpu.vector_store %arg6[%c0_11, %c0_12], %12 {strides = array<i32>} : memref<8x8xf32, #tpu.memory_space<vmem>>, vector<8x8xf32>,
    return
  }
  func.func @transform_0(%arg0: i32) -> (i32, i32) {
    %c0_i32 = arith.constant 0 : i32
    %c0_i32_0 = arith.constant 0 : i32
    return %arg0, %c0_i32 : i32, i32
  }
  func.func @transform_1(%arg0: i32) -> (i32, i32) {
    %c0_i32 = arith.constant 0 : i32
    %c0_i32_0 = arith.constant 0 : i32
    %c0_i32_1 = arith.constant 0 : i32
    return %c0_i32, %c0_i32_0 : i32, i32
  }
  func.func @transform_2(%arg0: i32) -> (i32, i32) {
    %c0_i32 = arith.constant 0 : i32
    %c0_i32_0 = arith.constant 0 : i32
    %c0_i32_1 = arith.constant 0 : i32
    return %c0_i32, %c0_i32_0 : i32, i32
  }
  func.func @transform_3(%arg0: i32) -> (i32, i32) {
    %c0_i32 = arith.constant 0 : i32
    %c0_i32_0 = arith.constant 0 : i32
    %c0_i32_1 = arith.constant 0 : i32
    return %c0_i32, %c0_i32_0 : i32, i32
  }
  func.func @transform_4(%arg0: i32) -> (i32, i32) {
    %c0_i32 = arith.constant 0 : i32
    %c0_i32_0 = arith.constant 0 : i32
    %c0_i32_1 = arith.constant 0 : i32
    return %c0_i32, %c0_i32_0 : i32, i32
  }
  func.func @transform_5(%arg0: i32) -> (i32, i32) {
    %c0_i32 = arith.constant 0 : i32
    %c0_i32_0 = arith.constant 0 : i32
    return %arg0, %c0_i32 : i32, i32
  }
}

</mosaic_0001>

<llo_original>
// kernel: tpu_custom_call.1
$region0: #{tpu_custom_call.1}
  #allocation0 [shape = 'u32[]', space=smem, size = 0x4, offset = 0x4, fixed_abs, tag = 'smem constant byte address 0x4 - core index']
  #allocation1 [shape = 'u32[144,128]{1,0:T(1,128)}', space=vmem, size = 0x12000, scoped, tag = 'internal scratch']
  #allocation2 [shape = 'f32[1,1]{1,0:T(1,128)S(6)}', space=smem, size = 0x200, scoped, tag = 'scoped memory for tpu_custom_call.1']
  %s0 = inlined_call_operand.vmem [shape: f32[8,128], index: 0, kind: input, shape index: {}]
  %s1 = inlined_call_operand.vmem [shape: f32[128,256], index: 1, kind: input, shape index: {}]
  %s2 = inlined_call_operand.vmem [shape: f32[1,256], index: 2, kind: input, shape index: {}]
  %s3 = inlined_call_operand.vmem [shape: f32[256,8], index: 3, kind: input, shape index: {}]
  %s4 = inlined_call_operand.<no memory space> [shape: f32[1,1], index: 4, kind: input, shape index: {}]
  %s5 = inlined_call_operand.hbm [shape: f32[8,8], index: 5, kind: output, shape index: {}]
  %s6 = sld [smem:[#allocation0]]
  $region30: #{tpu_custom_call.1} parent=0
    _
  %s8 = ssub.s32 1, %s6
  %s9 = scalar_select 0, %s8, %s6
  %10 = sst [smem:[#allocation2]] %s4
  $region1: #{tpu_custom_call.1} parent=0
    #allocation3 [shape = 'u8[4096]{0}', space=vmem, size = 0x1000, scoped, tag = 'output window, operand 0, single buffered']
    #allocation4 [shape = 's32[1]{0}', space=sflag, size = 0x4, scoped, tag = 'scoped memory for tpu_custom_call.1']
    %11 = vsyncpa [#allocation4], 0
    // Predicated region
    $region2: #{tpu_custom_call.1} parent=1 // pred_check
      _
    $region3: #{tpu_custom_call.1} parent=1 // pred_check_branch
      %13 = sbr.rel (0) target = $region5
    $region4: #{tpu_custom_call.1} parent=1 // pred_region
      _
    $region5: #{tpu_custom_call.1} parent=1 // pred_fallthru
      _
    // Predicated region
    $region6: #{tpu_custom_call.1} parent=1 // pred_check
      _
    $region7: #{tpu_custom_call.1} parent=1 // pred_check_branch
      %15 = sbr.rel (0) target = $region9
    $region8: #{tpu_custom_call.1} parent=1 // pred_region
      _
    $region9: #{tpu_custom_call.1} parent=1 // pred_fallthru
      _
    // Predicated region
    $region10: #{tpu_custom_call.1} parent=1 // pred_check
      _
    $region11: #{tpu_custom_call.1} parent=1 // pred_check_branch
      %17 = sbr.rel (0) target = $region13
    $region12: #{tpu_custom_call.1} parent=1 // pred_region
      _
    $region13: #{tpu_custom_call.1} parent=1 // pred_fallthru
      _
    // Predicated region
    $region14: #{tpu_custom_call.1} parent=1 // pred_check
      _
    $region15: #{tpu_custom_call.1} parent=1 // pred_check_branch
      %19 = sbr.rel (0) target = $region17
    $region16: #{tpu_custom_call.1} parent=1 // pred_region
      _
    $region17: #{tpu_custom_call.1} parent=1 // pred_fallthru
      _
    // Predicated region
    $region18: #{tpu_custom_call.1} parent=1 // pred_check
      _
    $region19: #{tpu_custom_call.1} parent=1 // pred_check_branch
      %21 = sbr.rel (0) target = $region21
    $region20: #{tpu_custom_call.1} parent=1 // pred_region
      _
    $region21: #{tpu_custom_call.1} parent=1 // pred_fallthru
      _
    %v22 = vld [vmem:[%s0] sm:$0xff]
    %v23 = vld [vmem:[%s1] sm:$0xff]
    %v24 = vld [vmem:[%s1 + $0x8] sm:$0xff]
    %v25 = vld [vmem:[%s1 + $0x10] sm:$0xff]
    %v26 = vld [vmem:[%s1 + $0x18] sm:$0xff]
    %v27 = vld [vmem:[%s1 + $0x20] sm:$0xff]
    %v28 = vld [vmem:[%s1 + $0x28] sm:$0xff]
    %v29 = vld [vmem:[%s1 + $0x30] sm:$0xff]
    %v30 = vld [vmem:[%s1 + $0x38] sm:$0xff]
    %v31 = vld [vmem:[%s1 + $0x40] sm:$0xff]
    %v32 = vld [vmem:[%s1 + $0x48] sm:$0xff]
    %v33 = vld [vmem:[%s1 + $0x50] sm:$0xff]
    %v34 = vld [vmem:[%s1 + $0x58] sm:$0xff]
    %v35 = vld [vmem:[%s1 + $0x60] sm:$0xff]
    %v36 = vld [vmem:[%s1 + $0x68] sm:$0xff]
    %v37 = vld [vmem:[%s1 + $0x70] sm:$0xff]
    %v38 = vld [vmem:[%s1 + $0x78] sm:$0xff]
    %v39 = vld [vmem:[%s1 + $0x80] sm:$0xff]
    %v40 = vld [vmem:[%s1 + $0x88] sm:$0xff]
    %v41 = vld [vmem:[%s1 + $0x90] sm:$0xff]
    %v42 = vld [vmem:[%s1 + $0x98] sm:$0xff]
    %v43 = vld [vmem:[%s1 + $0xa0] sm:$0xff]
    %v44 = vld [vmem:[%s1 + $0xa8] sm:$0xff]
    %v45 = vld [vmem:[%s1 + $0xb0] sm:$0xff]
    %v46 = vld [vmem:[%s1 + $0xb8] sm:$0xff]
    %v47 = vld [vmem:[%s1 + $0xc0] sm:$0xff]
    %v48 = vld [vmem:[%s1 + $0xc8] sm:$0xff]
    %v49 = vld [vmem:[%s1 + $0xd0] sm:$0xff]
    %v50 = vld [vmem:[%s1 + $0xd8] sm:$0xff]
    %v51 = vld [vmem:[%s1 + $0xe0] sm:$0xff]
    %v52 = vld [vmem:[%s1 + $0xe8] sm:$0xff]
    %v53 = vld [vmem:[%s1 + $0xf0] sm:$0xff]
    %v54 = vld [vmem:[%s1 + $0xf8] sm:$0xff]
    %v55 = vld [vmem:[%s2] sm:$0x3]
    %v57 = vlaneseq
    %v58 = vshrl.u32 %v57, 7
    %v59 = vsub.s32 0, %v58
    %v60 = vrot.slane %v55, %v59
    %v61 = vlaneseq
    %v62 = vshrl.u32 %v61, 7
    %v63 = vsub.s32 1, %v62
    %v64 = vrot.slane %v55, %v63
    %67 = vmatprep.subr.mxu0 %v24
    %68 = vmatpush1.msra.mxu0 %v23
    %69 = vmatprep.subr.mxu0 %v26
    %70 = vmatpush1.msra.mxu0 %v25
    %71 = vmatprep.subr.mxu0 %v28
    %72 = vmatpush1.msra.mxu0 %v27
    %73 = vmatprep.subr.mxu0 %v30
    %74 = vmatpush1.msra.mxu0 %v29
    %75 = vmatprep.subr.mxu0 %v32
    %76 = vmatpush1.msra.mxu0 %v31
    %77 = vmatprep.subr.mxu0 %v34
    %78 = vmatpush1.msra.mxu0 %v33
    %79 = vmatprep.subr.mxu0 %v36
    %80 = vmatpush1.msra.mxu0 %v35
    %81 = vmatprep.subr.mxu0 %v38
    %82 = vmatpush1.msra.mxu0 %v37
    %83 = vmatprep.subr.mxu0 %v40
    %84 = vmatpush1.msra.mxu0 %v39
    %85 = vmatprep.subr.mxu0 %v42
    %86 = vmatpush1.msra.mxu0 %v41
    %87 = vmatprep.subr.mxu0 %v44
    %88 = vmatpush1.msra.mxu0 %v43
    %89 = vmatprep.subr.mxu0 %v46
    %90 = vmatpush1.msra.mxu0 %v45
    %91 = vmatprep.subr.mxu0 %v48
    %92 = vmatpush1.msra.mxu0 %v47
    %93 = vmatprep.subr.mxu0 %v50
    %94 = vmatpush1.msra.mxu0 %v49
    %95 = vmatprep.subr.mxu0 %v52
    %96 = vmatpush1.msra.mxu0 %v51
    %97 = vmatprep.subr.mxu0 %v54
    %98 = vmatpush1.msra.mxu0 %v53
    %99 = vmatprep.subr.mxu0 0.0
    %100 = vmatpush1.msra.mxu0 0.0
    %101 = vmatprep.subr.mxu0 0.0
    %102 = vmatpush1.msra.mxu0 0.0
    %103 = vmatprep.subr.mxu0 0.0
    %104 = vmatpush1.msra.mxu0 0.0
    %105 = vmatprep.subr.mxu0 0.0
    %106 = vmatpush1.msra.mxu0 0.0
    %107 = vmatprep.subr.mxu0 0.0
    %108 = vmatpush1.msra.mxu0 0.0
    %109 = vmatprep.subr.mxu0 0.0
    %110 = vmatpush1.msra.mxu0 0.0
    %111 = vmatprep.subr.mxu0 0.0
    %112 = vmatpush1.msra.mxu0 0.0
    %113 = vmatprep.subr.mxu0 0.0
    %114 = vmatpush1.msra.mxu0 0.0
    %115 = vmatprep.subr.mxu0 0.0
    %116 = vmatpush1.msra.mxu0 0.0
    %117 = vmatprep.subr.mxu0 0.0
    %118 = vmatpush1.msra.mxu0 0.0
    %119 = vmatprep.subr.mxu0 0.0
    %120 = vmatpush1.msra.mxu0 0.0
    %121 = vmatprep.subr.mxu0 0.0
    %122 = vmatpush1.msra.mxu0 0.0
    %123 = vmatprep.subr.mxu0 0.0
    %124 = vmatpush1.msra.mxu0 0.0
    %125 = vmatprep.subr.mxu0 0.0
    %126 = vmatpush1.msra.mxu0 0.0
    %127 = vmatprep.subr.mxu0 0.0
    %128 = vmatpush1.msra.mxu0 0.0
    %129 = vmatprep.subr.mxu0 0.0
    %130 = vmatpush1.msra.mxu0 0.0
    %131 = vmatprep.mubr.f32.mxu0 0.0
    %132 = vmatmul.mubr.f32.gmra.mrb[0].mxu0 %v22
    %v133 = vpop.f32.mrb[0].mxu0
    %v134 = vadd.f32 %v60, %v133
    %v135 = vpop.f32.mrb[0].mxu0
    %v136 = vadd.f32 %v64, %v135
    %137 = vdwg.mxu0
    %v138 = vmax.f32 %v134, 0.0
    %v139 = vmax.f32 %v136, 0.0
    %v140 = vld [vmem:[%s3] sm:$0xff]
    %v141 = vld [vmem:[%s3 + $0x8] sm:$0xff]
    %v142 = vld [vmem:[%s3 + $0x10] sm:$0xff]
    %v143 = vld [vmem:[%s3 + $0x18] sm:$0xff]
    %v144 = vld [vmem:[%s3 + $0x20] sm:$0xff]
    %v145 = vld [vmem:[%s3 + $0x28] sm:$0xff]
    %v146 = vld [vmem:[%s3 + $0x30] sm:$0xff]
    %v147 = vld [vmem:[%s3 + $0x38] sm:$0xff]
    %v148 = vld [vmem:[%s3 + $0x40] sm:$0xff]
    %v149 = vld [vmem:[%s3 + $0x48] sm:$0xff]
    %v150 = vld [vmem:[%s3 + $0x50] sm:$0xff]
    %v151 = vld [vmem:[%s3 + $0x58] sm:$0xff]
    %v152 = vld [vmem:[%s3 + $0x60] sm:$0xff]
    %v153 = vld [vmem:[%s3 + $0x68] sm:$0xff]
    %v154 = vld [vmem:[%s3 + $0x70] sm:$0xff]
    %v155 = vld [vmem:[%s3 + $0x78] sm:$0xff]
    %v156 = vld [vmem:[%s3 + $0x80] sm:$0xff]
    %v157 = vld [vmem:[%s3 + $0x88] sm:$0xff]
    %v158 = vld [vmem:[%s3 + $0x90] sm:$0xff]
    %v159 = vld [vmem:[%s3 + $0x98] sm:$0xff]
    %v160 = vld [vmem:[%s3 + $0xa0] sm:$0xff]
    %v161 = vld [vmem:[%s3 + $0xa8] sm:$0xff]
    %v162 = vld [vmem:[%s3 + $0xb0] sm:$0xff]
    %v163 = vld [vmem:[%s3 + $0xb8] sm:$0xff]
    %v164 = vld [vmem:[%s3 + $0xc0] sm:$0xff]
    %v165 = vld [vmem:[%s3 + $0xc8] sm:$0xff]
    %v166 = vld [vmem:[%s3 + $0xd0] sm:$0xff]
    %v167 = vld [vmem:[%s3 + $0xd8] sm:$0xff]
    %v168 = vld [vmem:[%s3 + $0xe0] sm:$0xff]
    %v169 = vld [vmem:[%s3 + $0xe8] sm:$0xff]
    %v170 = vld [vmem:[%s3 + $0xf0] sm:$0xff]
    %v171 = vld [vmem:[%s3 + $0xf8] sm:$0xff]
    %s172 = sld [smem:[#allocation2]]
    %v173 = vstv %s172
    %174 = vmatprep.subr.mxu0 0.0
    %175 = vmatpush1.msra.mxu0 %v140
    %176 = vmatprep.subr.mxu0 0.0
    %177 = vmatpush1.msra.mxu0 %v141
    %178 = vmatprep.subr.mxu0 0.0
    %179 = vmatpush1.msra.mxu0 %v142
    %180 = vmatprep.subr.mxu0 0.0
    %181 = vmatpush1.msra.mxu0 %v143
    %182 = vmatprep.subr.mxu0 0.0
    %183 = vmatpush1.msra.mxu0 %v144
    %184 = vmatprep.subr.mxu0 0.0
    %185 = vmatpush1.msra.mxu0 %v145
    %186 = vmatprep.subr.mxu0 0.0
    %187 = vmatpush1.msra.mxu0 %v146
    %188 = vmatprep.subr.mxu0 0.0
    %189 = vmatpush1.msra.mxu0 %v147
    %190 = vmatprep.subr.mxu0 0.0
    %191 = vmatpush1.msra.mxu0 %v148
    %192 = vmatprep.subr.mxu0 0.0
    %193 = vmatpush1.msra.mxu0 %v149
    %194 = vmatprep.subr.mxu0 0.0
    %195 = vmatpush1.msra.mxu0 %v150
    %196 = vmatprep.subr.mxu0 0.0
    %197 = vmatpush1.msra.mxu0 %v151
    %198 = vmatprep.subr.mxu0 0.0
    %199 = vmatpush1.msra.mxu0 %v152
    %200 = vmatprep.subr.mxu0 0.0
    %201 = vmatpush1.msra.mxu0 %v153
    %202 = vmatprep.subr.mxu0 0.0
    %203 = vmatpush1.msra.mxu0 %v154
    %204 = vmatprep.subr.mxu0 0.0
    %205 = vmatpush1.msra.mxu0 %v155
    %206 = vmatprep.subr.mxu0 0.0
    %207 = vmatpush1.msra.mxu0 %v156
    %208 = vmatprep.subr.mxu0 0.0
    %209 = vmatpush1.msra.mxu0 %v157
    %210 = vmatprep.subr.mxu0 0.0
    %211 = vmatpush1.msra.mxu0 %v158
    %212 = vmatprep.subr.mxu0 0.0
    %213 = vmatpush1.msra.mxu0 %v159
    %214 = vmatprep.subr.mxu0 0.0
    %215 = vmatpush1.msra.mxu0 %v160
    %216 = vmatprep.subr.mxu0 0.0
    %217 = vmatpush1.msra.mxu0 %v161
    %218 = vmatprep.subr.mxu0 0.0
    %219 = vmatpush1.msra.mxu0 %v162
    %220 = vmatprep.subr.mxu0 0.0
    %221 = vmatpush1.msra.mxu0 %v163
    %222 = vmatprep.subr.mxu0 0.0
    %223 = vmatpush1.msra.mxu0 %v164
    %224 = vmatprep.subr.mxu0 0.0
    %225 = vmatpush1.msra.mxu0 %v165
    %226 = vmatprep.subr.mxu0 0.0
    %227 = vmatpush1.msra.mxu0 %v166
    %228 = vmatprep.subr.mxu0 0.0
    %229 = vmatpush1.msra.mxu0 %v167
    %230 = vmatprep.subr.mxu0 0.0
    %231 = vmatpush1.msra.mxu0 %v168
    %232 = vmatprep.subr.mxu0 0.0
    %233 = vmatpush1.msra.mxu0 %v169
    %234 = vmatprep.subr.mxu0 0.0
    %235 = vmatpush1.msra.mxu0 %v170
    %236 = vmatprep.subr.mxu0 0.0
    %237 = vmatpush1.msra.mxu0 %v171
    %238 = vmatprep.mubr.f32.mxu0 %v139
    %239 = vmatmul.mubr.f32.gmra.mrb[0].mxu0 %v138
    %v240 = vpop.f32.mrb[0].mxu0
    %v241 = vadd.f32 %v173, %v240
    %v242 = vpop.f32.mrb[0].mxu0
    %243 = vdwg.mxu0
    %vm244 = vcmask 64512
    %245 = vst.msk [vmem:[#allocation3] sm:$0xff] %vm244, %v241
    // Predicated region
    $region22: #{tpu_custom_call.1} parent=1 // pred_check
      _
    $region23: #{tpu_custom_call.1} parent=1 // pred_check_branch
      %247 = sbr.rel (0) target = $region25
    $region24: #{tpu_custom_call.1} parent=1 // pred_region
      %s249 = ssub.s32 128, 128
      %250 = vsyncadd [#allocation4], %s249
      %s252 = sshll.u32 [#allocation3], 4
      %s253 = int_to_ptr.vmem [resolvable:$true] %s252
      %255 = dma.vmem_to_hbm [thread:$0]  %s253, 128, %s5, [#allocation4]
    $region25: #{tpu_custom_call.1} parent=1 // pred_fallthru
      _
    // Predicated region
    $region26: #{tpu_custom_call.1} parent=1 // pred_check
      _
    $region27: #{tpu_custom_call.1} parent=1 // pred_check_branch
      %257 = sbr.rel (0) target = $region29
    $region28: #{tpu_custom_call.1} parent=1 // pred_region
      %258 = dma.done [#allocation4], 128
    $region29: #{tpu_custom_call.1} parent=1 // pred_fallthru
      _
    %259 = vsyncpa [#allocation4], 1

</llo_original>
